<compile_context>
chip_gen: v5e
topology: v5e:2x2
jax: 0.10.0
libtpu: 0.0.40
codegen_flags: <defaults>
</compile_context>

<pallas_src>
import jax
import jax.numpy as jnp
from jax.experimental import pallas as pl
from jax.experimental.pallas import tpu as pltpu


def make_positional_encoding(embed_dim: int, max_len: int = 5000,
                             dtype=jnp.float32) -> jnp.ndarray:
    """Deterministic sinusoidal PE table, shape (max_len, embed_dim).

    Mirrors the PyTorch __init__ exactly:
        pe[:, 0::2] = sin(pos * freqs)
        pe[:, 1::2] = cos(pos * freqs)
    """
    positions = jnp.arange(0, max_len, dtype=jnp.float32)[:, None]           # (max_len, 1)
    freqs = jnp.exp(
        jnp.arange(0, embed_dim, 2, dtype=jnp.float32)
        * (-jnp.log(jnp.float32(10000.0)) / embed_dim)
    )[None, :]                                                                # (1, D/2)
    arguments = positions * freqs                                             # (max_len, D/2)
    # interleave sin/cos -> [sin0, cos0, sin1, cos1, ...]
    pe = jnp.stack([jnp.sin(arguments), jnp.cos(arguments)], axis=-1)
    return pe.reshape(max_len, embed_dim).astype(dtype)


def _pe_add_kernel(x_ref, pe_ref, o_ref):
    # x_ref / o_ref: (tB, tT, D); pe_ref: (tT, D) -- broadcast over the batch rows.
    o_ref[...] = (x_ref[...] + pe_ref[...]).astype(o_ref.dtype)


def _pe_add_flat_kernel(x_ref, pe_ref, o_ref):
    # x_ref / o_ref: (B, tL); pe_ref: (1, tL) -- sublane-broadcast add.
    o_ref[...] = (x_ref[...] + pe_ref[...]).astype(o_ref.dtype)


def positional_encoding_forward(x: jnp.ndarray, pe_full: jnp.ndarray,
                                *,
                                target_tile_bytes: int = 4 * 1024 * 1024,
                                vmem_limit_bytes: int = 48 * 1024 * 1024,
                                donate_x: bool = False) -> jnp.ndarray:
    """x: (B, T, D); pe_full: (max_len, D). Returns x + pe[:T] broadcast over batch."""
    B, T, D = x.shape
    max_len, d_pe = pe_full.shape
    if d_pe != D:
        raise ValueError(f"embed_dim mismatch: x has D={D}, pe has D={d_pe}")
    if T > max_len:
        raise ValueError(f"sequence length T={T} exceeds max_len={max_len}")

    # Static slice to the used rows, cast to x.dtype (halves PE DMA bytes for bf16).
    # NOTE: PyTorch adds an fp32 PE and rounds after the add; this rounds PE first.
    pe = pe_full[:T].astype(x.dtype)                                          # (T, D)
    itemsize = jnp.dtype(x.dtype).itemsize
    sub = max(8, 32 // itemsize)            # sublane multiple: 8 f32 / 16 bf16 / 32 i8

    compiler_params_kwargs = dict(vmem_limit_bytes=vmem_limit_bytes)

    if D % 128 == 0:
        row_bytes = D * itemsize
        seq_bytes = T * row_bytes
        if seq_bytes <= target_tile_bytes:
            # Whole sequence fits in one tile: block batch rows per grid step so each
            # step still moves ~target bytes. PE block index is constant -> fetched once.
            tT = T
            tB = max(1, min(B, target_tile_bytes // max(seq_bytes, 1)))
            dim_sem = ("parallel", "parallel")
        else:
            # Tile the sequence dim; batch is the inner, sequential ("arbitrary") axis
            # so the PE block index (t, 0) is unchanged -> repeated PE DMA is elided.
            tB = 1
            tT = min(T, max(sub, target_tile_bytes // row_bytes))
            tT = (tT // sub) * sub
            if tT == 0 or tT >= T:
                tT = T
            dim_sem = ("parallel", "arbitrary")

        grid = (pl.cdiv(T, tT), pl.cdiv(B, tB))
        return pl.pallas_call(
            _pe_add_kernel,
            out_shape=jax.ShapeDtypeStruct((B, T, D), x.dtype),
            grid_spec=pltpu.PrefetchScalarGridSpec(
                num_scalar_prefetch=0,
                grid=grid,
                in_specs=[
                    pl.BlockSpec((tB, tT, D), lambda t, b: (b, t, 0)),
                    pl.BlockSpec((tT, D), lambda t, b: (t, 0)),
                ],
                out_specs=pl.BlockSpec((tB, tT, D), lambda t, b: (b, t, 0)),
            ),
            compiler_params=pltpu.CompilerParams(
                dimension_semantics=dim_sem, **compiler_params_kwargs),
            input_output_aliases=({0: 0} if donate_x else {}),
        )(x, pe)

    # Fallback for D not a multiple of 128 (e.g. demo D=32): fold (T, D) onto the lane
    # axis so the output stays lane-dense (unmasked stores).
    L = T * D
    x2 = x.reshape(B, L)
    pe_flat = pe.reshape(1, L)
    # A (rows, tL) VMEM buffer with rows < 8 is physically padded to 8 sublanes:
    # account for that when sizing tL so double-buffered x/pe/out stay within budget.
    pad_rows = max(B, 8)
    tL = max(128, ((target_tile_bytes // (pad_rows * itemsize)) // 128) * 128)
    tL = min(tL, L)                          # either a multiple of 128 or the full dim
    grid = (pl.cdiv(L, tL),)
    out = pl.pallas_call(
        _pe_add_flat_kernel,
        out_shape=jax.ShapeDtypeStruct((B, L), x.dtype),
        grid_spec=pltpu.PrefetchScalarGridSpec(
            num_scalar_prefetch=0,
            grid=grid,
            in_specs=[
                pl.BlockSpec((B, tL), lambda t: (0, t)),
                pl.BlockSpec((1, tL), lambda t: (0, t)),
            ],
            out_specs=pl.BlockSpec((B, tL), lambda t: (0, t)),
        ),
        compiler_params=pltpu.CompilerParams(
            dimension_semantics=("parallel",), **compiler_params_kwargs),
    )(x2, pe_flat)
    return out.reshape(B, T, D)


if __name__ == "__main__":
    key = jax.random.PRNGKey(0)
    max_len = 256

    # Test 1: small, odd-D fallback path (D % 128 != 0), shapes consistent with the module.
    B, T, D = 2, 8, 32
    x = jax.random.normal(key, (B, T, D), dtype=jnp.float32)
    pe_full = make_positional_encoding(D, max_len)
    out = jax.block_until_ready(positional_encoding_forward(x, pe_full))
    ref = x + pe_full[None, :T, :]
    assert out.shape == (B, T, D)
    assert jnp.allclose(out, ref, atol=1e-6), "mismatch vs reference (fallback path)"

    # Test 2: lane-dense D, whole sequence fits -> batch-blocked main path (PE read once).
    B2, T2, D2 = 2, 16, 128
    x2 = jax.random.normal(jax.random.PRNGKey(0), (B2, T2, D2), dtype=jnp.float32)
    pe_full2 = make_positional_encoding(D2, max_len)
    out2 = jax.block_until_ready(positional_encoding_forward(x2, pe_full2))
    ref2 = x2 + pe_full2[None, :T2, :]
    assert out2.shape == (B2, T2, D2)
    assert jnp.allclose(out2, ref2, atol=1e-6), "mismatch vs reference (batch-blocked path)"

    # Test 3: bf16 + small target tile to force the sequence-tiled path
    # (grid=(T-tiles, B) with batch innermost, dtype-aware sublane rounding).
    B3, T3, D3 = 2, 128, 128
    x3 = jax.random.normal(jax.random.PRNGKey(0), (B3, T3, D3), dtype=jnp.bfloat16)
    pe_full3 = make_positional_encoding(D3, max_len)
    out3 = jax.block_until_ready(
        positional_encoding_forward(x3, pe_full3, target_tile_bytes=16 * 1024))
    ref3 = x3 + pe_full3[:T3].astype(jnp.bfloat16)[None, :, :]
    assert out3.shape == (B3, T3, D3)
    assert jnp.allclose(out3.astype(jnp.float32), ref3.astype(jnp.float32)), \
        "mismatch vs reference (sequence-tiled bf16 path)"

    print("KERNEL_OK")
</pallas_src>

<mosaic_0001>
module attributes {stable_mosaic.version = 11 : i64} {
  func.func @_pe_add_flat_kernel(%arg0: i32, %arg1: memref<2x256xf32, #tpu.memory_space<vmem>>, %arg2: memref<1x256xf32, #tpu.memory_space<vmem>>, %arg3: memref<2x256xf32, #tpu.memory_space<vmem>>) attributes {dimension_semantics = [#tpu.dimension_semantics<parallel>], iteration_bounds = array<i64: 1>, scalar_prefetch = 0 : i64, scratch_operands = 0 : i64, tpu.core_type = #tpu.core_type<tc>, window_params = [{transform_indices = @transform_0, window_bounds = array<i64: 2, 256>}, {transform_indices = @transform_1, window_bounds = array<i64: 1, 256>}, {transform_indices = @transform_2, window_bounds = array<i64: 2, 256>}]} {
    %c0 = arith.constant 0 : index
    %c0_0 = arith.constant 0 : index
    %0 = vector.load %arg1[%c0, %c0_0] : memref<2x256xf32, #tpu.memory_space<vmem>>, vector<2x256xf32>
    %c0_1 = arith.constant 0 : index
    %c0_2 = arith.constant 0 : index
    %1 = vector.load %arg2[%c0_1, %c0_2] : memref<1x256xf32, #tpu.memory_space<vmem>>, vector<1x256xf32>
    %2 = vector.broadcast %1 : vector<1x256xf32> to vector<2x256xf32>
    %3 = arith.addf %0, %2 : vector<2x256xf32>
    %c0_3 = arith.constant 0 : index
    %c0_4 = arith.constant 0 : index
    %4 = vector.load %arg3[%c0_3, %c0_4] : memref<2x256xf32, #tpu.memory_space<vmem>>, vector<2x256xf32>
    tpu.vector_store %arg3[%c0_3, %c0_4], %3 {strides = array<i32>} : memref<2x256xf32, #tpu.memory_space<vmem>>, vector<2x256xf32>,
    return
  }
  func.func @transform_0(%arg0: i32) -> (i32, i32) {
    %c0_i32 = arith.constant 0 : i32
    %c0_i32_0 = arith.constant 0 : i32
    return %c0_i32, %arg0 : i32, i32
  }
  func.func @transform_1(%arg0: i32) -> (i32, i32) {
    %c0_i32 = arith.constant 0 : i32
    %c0_i32_0 = arith.constant 0 : i32
    return %c0_i32, %arg0 : i32, i32
  }
  func.func @transform_2(%arg0: i32) -> (i32, i32) {
    %c0_i32 = arith.constant 0 : i32
    %c0_i32_0 = arith.constant 0 : i32
    return %c0_i32, %arg0 : i32, i32
  }
}

</mosaic_0001>

<llo_original>
// kernel: tpu_custom_call.1
$region0: #{tpu_custom_call.1}
  #allocation0 [shape = 'u32[]', space=smem, size = 0x4, offset = 0x4, fixed_abs, tag = 'smem constant byte address 0x4 - core index']
  #allocation1 [shape = 'u32[72,128]{1,0:T(1,128)}', space=vmem, size = 0x9000, scoped, tag = 'internal scratch']
  %s0 = inlined_call_operand.hbm [shape: f32[2,256], index: 0, kind: input, shape index: {}]
  %s1 = inlined_call_operand.hbm [shape: f32[1,256], index: 1, kind: input, shape index: {}]
  %s2 = inlined_call_operand.hbm [shape: f32[2,256], index: 2, kind: output, shape index: {}]
  %s3 = sld [smem:[#allocation0]]
  $region26: #{tpu_custom_call.1} parent=0
    _
  %s5 = ssub.s32 1, %s3
  %s6 = scalar_select 0, %s5, %s3
  $region1: #{tpu_custom_call.1} parent=0
    #allocation2 [shape = 'u8[2048]{0}', space=vmem, size = 0x800, scoped, tag = 'input window, operand 0, single buffered']
    #allocation3 [shape = 's32[1]{0}', space=sflag, size = 0x4, scoped, tag = 'scoped memory for tpu_custom_call.1']
    #allocation4 [shape = 's32[1]{0}', space=sflag, size = 0x4, scoped, tag = 'scoped memory for tpu_custom_call.1']
    #allocation5 [shape = 'u8[1024]{0}', space=vmem, size = 0x400, scoped, tag = 'input window, operand 1, single buffered']
    #allocation6 [shape = 's32[1]{0}', space=sflag, size = 0x4, scoped, tag = 'scoped memory for tpu_custom_call.1']
    #allocation7 [shape = 'u8[2048]{0}', space=vmem, size = 0x800, scoped, tag = 'output window, operand 0, single buffered']
    %7 = vsyncpa [#allocation3], 0
    %8 = vsyncpa [#allocation6], 0
    %9 = vsyncpa [#allocation4], 0
    // Predicated region
    $region2: #{tpu_custom_call.1} parent=1 // pred_check
      _
    $region3: #{tpu_custom_call.1} parent=1 // pred_check_branch
      %11 = sbr.rel (0) target = $region5
    $region4: #{tpu_custom_call.1} parent=1 // pred_region
      %13 = vsyncadd [#allocation3], 0
      %s15 = sshll.u32 %s0, 4
      %s16 = int_to_ptr.hbm [resolvable:$true] %s15
      %s17 = sshll.u32 [#allocation2], 4
      %s18 = int_to_ptr.vmem [resolvable:$true] %s17
      %20 = dma.hbm_to_vmem [thread:$0]  %s16, 64, %s18, [#allocation3]
    $region5: #{tpu_custom_call.1} parent=1 // pred_fallthru
      _
    // Predicated region
    $region6: #{tpu_custom_call.1} parent=1 // pred_check
      _
    $region7: #{tpu_custom_call.1} parent=1 // pred_check_branch
      %22 = sbr.rel (0) target = $region9
    $region8: #{tpu_custom_call.1} parent=1 // pred_region
      %24 = vsyncadd [#allocation6], 0
      %s26 = sshll.u32 %s1, 4
      %s27 = int_to_ptr.hbm [resolvable:$true] %s26
      %s28 = sshll.u32 [#allocation5], 4
      %s29 = int_to_ptr.vmem [resolvable:$true] %s28
      %31 = dma.hbm_to_vmem [thread:$0]  %s27, 32, %s29, [#allocation6]
    $region9: #{tpu_custom_call.1} parent=1 // pred_fallthru
      _
    // Predicated region
    $region10: #{tpu_custom_call.1} parent=1 // pred_check
      _
    $region11: #{tpu_custom_call.1} parent=1 // pred_check_branch
      %33 = sbr.rel (0) target = $region13
    $region12: #{tpu_custom_call.1} parent=1 // pred_region
      %35 = dma.done [#allocation3], 64
    $region13: #{tpu_custom_call.1} parent=1 // pred_fallthru
      _
    // Predicated region
    $region14: #{tpu_custom_call.1} parent=1 // pred_check
      _
    $region15: #{tpu_custom_call.1} parent=1 // pred_check_branch
      %37 = sbr.rel (0) target = $region17
    $region16: #{tpu_custom_call.1} parent=1 // pred_region
      %39 = dma.done [#allocation6], 32
    $region17: #{tpu_custom_call.1} parent=1 // pred_fallthru
      _
    %v40 = vld [vmem:[#allocation2] sm:$0xf]
    %v41 = vld [vmem:[#allocation5] sm:$0x3]
    %v43 = vperm.slane %v41, 0
    %v44 = vperm.slane %v41, 1
    %v45 = vrot.slane %v44, 6
    %vm46 = vcmask 1041408
    %v47 = vsel %vm46, %v43, %v45
    %v49 = vadd.f32 %v40, %v47
    %50 = vst [vmem:[#allocation7] sm:$0xf] %v49
    // Predicated region
    $region18: #{tpu_custom_call.1} parent=1 // pred_check
      _
    $region19: #{tpu_custom_call.1} parent=1 // pred_check_branch
      %52 = sbr.rel (0) target = $region21
    $region20: #{tpu_custom_call.1} parent=1 // pred_region
      %54 = vsyncadd [#allocation4], 0
      %s56 = sshll.u32 [#allocation7], 4
      %s57 = int_to_ptr.vmem [resolvable:$true] %s56
      %s58 = sshll.u32 %s2, 4
      %s59 = int_to_ptr.hbm [resolvable:$true] %s58
      %61 = dma.vmem_to_hbm [thread:$0]  %s57, 64, %s59, [#allocation4]
    $region21: #{tpu_custom_call.1} parent=1 // pred_fallthru
      _
    // Predicated region
    $region22: #{tpu_custom_call.1} parent=1 // pred_check
      _
    $region23: #{tpu_custom_call.1} parent=1 // pred_check_branch
      %63 = sbr.rel (0) target = $region25
    $region24: #{tpu_custom_call.1} parent=1 // pred_region
      %65 = dma.done [#allocation4], 64
    $region25: #{tpu_custom_call.1} parent=1 // pred_fallthru
      _
    %66 = vsyncpa [#allocation3], 1
    %67 = vsyncpa [#allocation6], 1
    %68 = vsyncpa [#allocation4], 1

</llo_original>
